<compile_context>
chip_gen: v5e
topology: v5e:2x2
jax: 0.10.0
libtpu: 0.0.40
codegen_flags: <defaults>
</compile_context>

<pallas_src>
import jax
import jax.numpy as jnp
from jax.experimental import pallas as pl
from jax.experimental.pallas import tpu as pltpu


def _round_up(x, m):
    return (x + m - 1) // m * m


def _pick_lane_tile(nhw):
    # Lane-dense tile (multiple of 512 lanes), capped so that double-buffered
    # cols (KC_pad x T bf16) + output (Ctot_pad x T fp32) blocks stay far below
    # v7x's 64 MiB physical VMEM even at much larger KC / Ctot.
    for t in (8192, 4096, 2048, 1024, 512):
        if nhw % t == 0:
            return t
    return nhw


def _ad_ac_kernel(cols_ref, w_ref, o_ref):
    """One fused MXU matmul per lane tile.

    cols_ref: (KC_pad, T)        bf16 im2col slab tile (batch folded into lanes)
    w_ref   : (Ctot_pad, KC_pad) bf16 fused [square; ver; hor] weights (zero-pad)
    o_ref   : (Ctot_pad, T)      fp32 channel-concatenated output tile
    """
    o_ref[...] = jnp.dot(
        w_ref[...], cols_ref[...],
        preferred_element_type=jnp.float32).astype(o_ref.dtype)


def ad_ac_forward(x_nchw, w_sq, w_v, w_h, *, kernel_size, padding,
                  compute_dtype=jnp.bfloat16):
    """AD_AC forward.  x_nchw: (N, Cin, H, W) -> (N, C1+C2+C3, H, W)."""
    k, p = kernel_size, padding
    assert k == 2 * p + 1, "branch outputs must share spatial size (k = 2p+1)"
    N, Cin, H, W = x_nchw.shape
    C1, C2, C3 = w_sq.shape[-1], w_v.shape[-1], w_h.shape[-1]
    Ctot = C1 + C2 + C3
    KC = k * k * Cin
    HW = H * W
    NHW = N * HW

    # bf16 packs 16 sublanes per vreg -> pad both matmul sublane dims to x16.
    Ctot_pad = _round_up(Ctot, 16)
    KC_pad = _round_up(KC, 16)

    # ---- fused weight matrix (Ctot_pad, KC_pad); column = (dy*k+dx)*Cin + c.
    w_sq_m = jnp.transpose(w_sq, (3, 0, 1, 2)).reshape(C1, KC)

    w_v_full = jnp.zeros((C2, k, k, Cin), w_v.dtype)              # dx == p only
    w_v_full = w_v_full.at[:, :, p, :].set(jnp.transpose(w_v[:, 0], (2, 0, 1)))

    w_h_full = jnp.zeros((C3, k, k, Cin), w_h.dtype)              # dy == p only
    w_h_full = w_h_full.at[:, p, :, :].set(jnp.transpose(w_h[0], (2, 0, 1)))

    w_all = jnp.concatenate(
        [w_sq_m, w_v_full.reshape(C2, KC), w_h_full.reshape(C3, KC)], axis=0)
    w_pad = jnp.zeros((Ctot_pad, KC_pad), compute_dtype)
    w_pad = w_pad.at[:Ctot, :KC].set(w_all.astype(compute_dtype))

    # ---- im2col slab (KC_pad, N*HW): pure layout plumbing, one fused XLA op.
    # Row index  = (dy*k + dx)*Cin + c   (matches the weight column ordering)
    # Lane index = n*HW + h*W + w        (batch folded under the lane dim)
    xq = jnp.transpose(x_nchw, (1, 0, 2, 3)).astype(compute_dtype)  # (Cin,N,H,W)
    xp = jnp.pad(xq, ((0, 0), (0, 0), (p, p), (p, p)))
    taps = [xp[:, :, dy:dy + H, dx:dx + W]            # each (Cin, N, H, W)
            for dy in range(k) for dx in range(k)]
    cols = jnp.stack(taps, axis=0).reshape(KC, NHW)
    cols = jnp.pad(cols, ((0, KC_pad - KC), (0, 0)))

    # ---- single fused matmul for the whole batch (lane-dim tiled if large).
    t = _pick_lane_tile(NHW)
    grid = (NHW // t,)
    out = pl.pallas_call(
        _ad_ac_kernel,
        out_shape=jax.ShapeDtypeStruct((Ctot_pad, NHW), x_nchw.dtype),
        grid=grid,
        in_specs=[
            pl.BlockSpec((KC_pad, t), lambda j: (0, j)),
            pl.BlockSpec((Ctot_pad, KC_pad), lambda j: (0, 0)),  # stays resident
        ],
        out_specs=pl.BlockSpec((Ctot_pad, t), lambda j: (0, j)),
        compiler_params=pltpu.CompilerParams(
            dimension_semantics=("parallel",)),
    )(cols, w_pad)

    # Drop channel padding, split lanes back into (N, H, W), restore NCHW.
    return jnp.transpose(out[:Ctot].reshape(Ctot, N, H, W), (1, 0, 2, 3))


def _reference_forward(x_nchw, w_sq, w_v, w_h, *, padding):
    """Pure-JAX reference (mirrors the PyTorch module), exact fp32 math."""
    p = padding
    dn = ('NCHW', 'HWIO', 'NCHW')
    prec = jax.lax.Precision.HIGHEST
    y1 = jax.lax.conv_general_dilated(x_nchw, w_sq, (1, 1), [(p, p), (p, p)],
                                      dimension_numbers=dn, precision=prec)
    y2 = jax.lax.conv_general_dilated(x_nchw, w_v, (1, 1), [(p, p), (0, 0)],
                                      dimension_numbers=dn, precision=prec)
    y3 = jax.lax.conv_general_dilated(x_nchw, w_h, (1, 1), [(0, 0), (p, p)],
                                      dimension_numbers=dn, precision=prec)
    return jnp.concatenate([y1, y2, y3], axis=1)


if __name__ == "__main__":
    # Small shapes consistent with the module: batch=2, in_channels=4, 16x16,
    # out_channels=12, kernel_size=3, padding=1 (stride=1, dilation=1, groups=1).
    N, Cin, H, W = 2, 4, 16, 16
    out_channels, k, p = 12, 3, 1
    C1 = int(out_channels * 0.5)      # square_conv -> 6
    C2 = int(out_channels * 0.33)     # ver_conv    -> 3
    C3 = int(out_channels * 0.167)    # hor_conv    -> 2  (6+3+2=11, as in torch)

    key = jax.random.PRNGKey(0)
    kx, k1, k2, k3 = jax.random.split(key, 4)
    x = jax.random.normal(kx, (N, Cin, H, W), dtype=jnp.float32)
    # Weights stored HWIO (kh, kw, Cin, Cout), deterministic init.
    w_sq = 0.1 * jax.random.normal(k1, (k, k, Cin, C1), dtype=jnp.float32)
    w_v = 0.1 * jax.random.normal(k2, (k, 1, Cin, C2), dtype=jnp.float32)
    w_h = 0.1 * jax.random.normal(k3, (1, k, Cin, C3), dtype=jnp.float32)

    out = ad_ac_forward(x, w_sq, w_v, w_h, kernel_size=k, padding=p)
    out = jax.block_until_ready(out)

    # Reference on bf16-quantized inputs (identical quantization to the kernel
    # path), exact fp32 conv -> only summation-order differences remain.
    # NOTE: relative to a pure-fp32 PyTorch module there is additional bf16
    # input-quantization error by construction (compute_dtype choice).
    bf = jnp.bfloat16
    ref = _reference_forward(
        x.astype(bf).astype(jnp.float32),
        w_sq.astype(bf).astype(jnp.float32),
        w_v.astype(bf).astype(jnp.float32),
        w_h.astype(bf).astype(jnp.float32),
        padding=p)

    assert out.shape == (N, C1 + C2 + C3, H, W), out.shape
    assert jnp.allclose(out, ref, rtol=1e-4, atol=1e-4), \
        float(jnp.max(jnp.abs(out - ref)))

    print("KERNEL_OK")
</pallas_src>

<mosaic_0001>
module attributes {stable_mosaic.version = 11 : i64} {
  func.func @_ad_ac_kernel(%arg0: i32, %arg1: memref<48x512xbf16, #tpu.memory_space<vmem>>, %arg2: memref<16x48xbf16, #tpu.memory_space<vmem>>, %arg3: memref<16x512xf32, #tpu.memory_space<vmem>>) attributes {dimension_semantics = [#tpu.dimension_semantics<parallel>], iteration_bounds = array<i64: 1>, scalar_prefetch = 0 : i64, scratch_operands = 0 : i64, tpu.core_type = #tpu.core_type<tc>, window_params = [{transform_indices = @transform_0, window_bounds = array<i64: 48, 512>}, {pipeline_mode = #tpu.pipeline_mode<synchronous>, transform_indices = @transform_1, window_bounds = array<i64: 16, 48>}, {transform_indices = @transform_2, window_bounds = array<i64: 16, 512>}]} {
    %c0 = arith.constant 0 : index
    %c0_0 = arith.constant 0 : index
    %0 = vector.load %arg2[%c0, %c0_0] : memref<16x48xbf16, #tpu.memory_space<vmem>>, vector<16x48xbf16>
    %c0_1 = arith.constant 0 : index
    %c0_2 = arith.constant 0 : index
    %1 = vector.load %arg1[%c0_1, %c0_2] : memref<48x512xbf16, #tpu.memory_space<vmem>>, vector<48x512xbf16>
    %cst = arith.constant dense<0.000000e+00> : vector<16x512xf32>
    %2 = tpu.matmul %0, %1, %cst {dimension_numbers = #tpu.dot_dimension_numbers<[1], [0], [0], [1], [0, 0, 1, 1], [], []>} : vector<16x48xbf16>, vector<48x512xbf16>, vector<16x512xf32> -> vector<16x512xf32>
    %c0_3 = arith.constant 0 : index
    %c0_4 = arith.constant 0 : index
    %3 = vector.load %arg3[%c0_3, %c0_4] : memref<16x512xf32, #tpu.memory_space<vmem>>, vector<16x512xf32>
    tpu.vector_store %arg3[%c0_3, %c0_4], %2 {strides = array<i32>} : memref<16x512xf32, #tpu.memory_space<vmem>>, vector<16x512xf32>,
    return
  }
  func.func @transform_0(%arg0: i32) -> (i32, i32) {
    %c0_i32 = arith.constant 0 : i32
    %c0_i32_0 = arith.constant 0 : i32
    return %c0_i32, %arg0 : i32, i32
  }
  func.func @transform_1(%arg0: i32) -> (i32, i32) {
    %c0_i32 = arith.constant 0 : i32
    %c0_i32_0 = arith.constant 0 : i32
    %c0_i32_1 = arith.constant 0 : i32
    return %c0_i32, %c0_i32_0 : i32, i32
  }
  func.func @transform_2(%arg0: i32) -> (i32, i32) {
    %c0_i32 = arith.constant 0 : i32
    %c0_i32_0 = arith.constant 0 : i32
    return %c0_i32, %arg0 : i32, i32
  }
}

</mosaic_0001>

<llo_original>
// kernel: tpu_custom_call.1
$region0: #{tpu_custom_call.1}
  #allocation0 [shape = 'u32[]', space=smem, size = 0x4, offset = 0x4, fixed_abs, tag = 'smem constant byte address 0x4 - core index']
  #allocation1 [shape = 'u32[72,128]{1,0:T(1,128)}', space=vmem, size = 0x9000, scoped, tag = 'internal scratch']
  %s0 = inlined_call_operand.hbm [shape: bf16[48,512], index: 0, kind: input, shape index: {}]
  %s1 = inlined_call_operand.hbm [shape: bf16[16,48], index: 1, kind: input, shape index: {}]
  %s2 = inlined_call_operand.hbm [shape: f32[16,512], index: 2, kind: output, shape index: {}]
  %s3 = sld [smem:[#allocation0]]
  $region26: #{tpu_custom_call.1} parent=0
    _
  %s5 = ssub.s32 1, %s3
  %s6 = scalar_select 0, %s5, %s3
  $region1: #{tpu_custom_call.1} parent=0
    #allocation2 [shape = 'u8[49152]{0}', space=vmem, size = 0xc000, scoped, tag = 'input window, operand 0, single buffered']
    #allocation3 [shape = 's32[1]{0}', space=sflag, size = 0x4, scoped, tag = 'scoped memory for tpu_custom_call.1']
    #allocation4 [shape = 's32[1]{0}', space=sflag, size = 0x4, scoped, tag = 'scoped memory for tpu_custom_call.1']
    #allocation5 [shape = 'u8[4096]{0}', space=vmem, size = 0x1000, scoped, tag = 'input window, operand 1, single buffered']
    #allocation6 [shape = 's32[1]{0}', space=sflag, size = 0x4, scoped, tag = 'scoped memory for tpu_custom_call.1']
    #allocation7 [shape = 'u8[32768]{0}', space=vmem, size = 0x8000, scoped, tag = 'output window, operand 0, single buffered']
    %7 = vsyncpa [#allocation3], 0
    %8 = vsyncpa [#allocation6], 0
    %9 = vsyncpa [#allocation4], 0
    // Predicated region
    $region2: #{tpu_custom_call.1} parent=1 // pred_check
      _
    $region3: #{tpu_custom_call.1} parent=1 // pred_check_branch
      %11 = sbr.rel (0) target = $region5
    $region4: #{tpu_custom_call.1} parent=1 // pred_region
      %13 = vsyncadd [#allocation3], 0
      %s14 = sshll.u32 %s0, 4
      %s15 = int_to_ptr.hbm [resolvable:$true] %s14
      %s16 = sshll.u32 [#allocation2], 4
      %s17 = int_to_ptr.vmem [resolvable:$true] %s16
      %22 = dma.hbm_to_vmem [thread:$0]  %s15, 1536, %s17, [#allocation3], 256, 256, 16
    $region5: #{tpu_custom_call.1} parent=1 // pred_fallthru
      _
    // Predicated region
    $region6: #{tpu_custom_call.1} parent=1 // pred_check
      _
    $region7: #{tpu_custom_call.1} parent=1 // pred_check_branch
      %24 = sbr.rel (0) target = $region9
    $region8: #{tpu_custom_call.1} parent=1 // pred_region
      %26 = vsyncadd [#allocation6], 0
      %s27 = sshll.u32 %s1, 4
      %s28 = int_to_ptr.hbm [resolvable:$true] %s27
      %s29 = sshll.u32 [#allocation5], 4
      %s30 = int_to_ptr.vmem [resolvable:$true] %s29
      %35 = dma.hbm_to_vmem [thread:$0]  %s28, 128, %s30, [#allocation6], 64, 64, 4
    $region9: #{tpu_custom_call.1} parent=1 // pred_fallthru
      _
    // Predicated region
    $region10: #{tpu_custom_call.1} parent=1 // pred_check
      _
    $region11: #{tpu_custom_call.1} parent=1 // pred_check_branch
      %37 = sbr.rel (0) target = $region13
    $region12: #{tpu_custom_call.1} parent=1 // pred_region
      %39 = dma.done [#allocation3], 1536
    $region13: #{tpu_custom_call.1} parent=1 // pred_fallthru
      _
    // Predicated region
    $region14: #{tpu_custom_call.1} parent=1 // pred_check
      _
    $region15: #{tpu_custom_call.1} parent=1 // pred_check_branch
      %41 = sbr.rel (0) target = $region17
    $region16: #{tpu_custom_call.1} parent=1 // pred_region
      %43 = dma.done [#allocation6], 128
    $region17: #{tpu_custom_call.1} parent=1 // pred_fallthru
      _
    %v45 = vld [vmem:[#allocation5] sm:$0xf]
    %v46 = vld [vmem:[#allocation5 + $0x4] sm:$0xf]
    %v47 = vld [vmem:[#allocation2] sm:$0xff]
    %v48 = vld [vmem:[#allocation2 + $0x8] sm:$0xff]
    %v49 = vld [vmem:[#allocation2 + $0x10] sm:$0xff]
    %v50 = vld [vmem:[#allocation2 + $0x18] sm:$0xff]
    %v51 = vld [vmem:[#allocation2 + $0x20] sm:$0xff]
    %v52 = vld [vmem:[#allocation2 + $0x28] sm:$0xff]
    %v53 = vld [vmem:[#allocation2 + $0x30] sm:$0xff]
    %v54 = vld [vmem:[#allocation2 + $0x38] sm:$0xff]
    %v55 = vld [vmem:[#allocation2 + $0x40] sm:$0xff]
    %v56 = vld [vmem:[#allocation2 + $0x48] sm:$0xff]
    %v57 = vld [vmem:[#allocation2 + $0x50] sm:$0xff]
    %v58 = vld [vmem:[#allocation2 + $0x58] sm:$0xff]
    %v61 = vunpack.c.l.b16 %v45
    %v62 = vunpack.c.l.b16 %v46
    %v63 = vpack.c.b16 %v62, %v61
    %v76 = vunpack.c.l.b16 %v47
    %v77 = vunpack.c.h.b16 %v47
    %v78 = vunpack.c.l.b16 %v48
    %v79 = vunpack.c.h.b16 %v48
    %v80 = vunpack.c.l.b16 %v49
    %v81 = vunpack.c.h.b16 %v49
    %v82 = vunpack.c.l.b16 %v50
    %v83 = vunpack.c.h.b16 %v50
    %v84 = vunpack.c.l.b16 %v51
    %v85 = vunpack.c.h.b16 %v51
    %v86 = vunpack.c.l.b16 %v52
    %v87 = vunpack.c.h.b16 %v52
    %v88 = vunpack.c.l.b16 %v53
    %v89 = vunpack.c.h.b16 %v53
    %v90 = vunpack.c.l.b16 %v54
    %v91 = vunpack.c.h.b16 %v54
    %v92 = vunpack.c.l.b16 %v55
    %v93 = vunpack.c.h.b16 %v55
    %v94 = vunpack.c.l.b16 %v56
    %v95 = vunpack.c.h.b16 %v56
    %v96 = vunpack.c.l.b16 %v57
    %v97 = vunpack.c.h.b16 %v57
    %v98 = vunpack.c.l.b16 %v58
    %v99 = vunpack.c.h.b16 %v58
    %v100 = vpack.c.b16 %v80, %v76
    %v101 = vpack.c.b16 %v81, %v77
    %v102 = vpack.c.b16 %v82, %v78
    %v103 = vpack.c.b16 %v83, %v79
    %v104 = vpack.c.b16 %v88, %v84
    %v105 = vpack.c.b16 %v89, %v85
    %v106 = vpack.c.b16 %v90, %v86
    %v107 = vpack.c.b16 %v91, %v87
    %v108 = vpack.c.b16 %v96, %v92
    %v109 = vpack.c.b16 %v97, %v93
    %v110 = vpack.c.b16 %v98, %v94
    %v111 = vpack.c.b16 %v99, %v95
    %vm124 = vcmask 392192
    %v126 = vsel %vm124, %v63, 0
    %128 = vmatpush.bf16.msra.mxu0 0
    %129 = vmatpush.bf16.msra.mxu0 0
    %130 = vmatpush.bf16.msra.mxu0 0
    %131 = vmatpush.bf16.msra.mxu0 0
    %132 = vmatpush.bf16.msra.mxu0 0
    %133 = vmatpush.bf16.msra.mxu0 %v108
    %134 = vmatpush.bf16.msra.mxu0 %v104
    %135 = vmatpush.bf16.msra.mxu0 %v100
    %136 = vmatmul.bf16.gmra.mxu0 %v126
    %v137 = vpop.f32.mrf.mxu0
    %v138 = vadd.f32 0.0, %v137
    %v139 = vpop.f32.mrf.mxu0
    %v140 = vadd.f32 0.0, %v139
    %141 = vdwg.mxu0
    %142 = vmatpush.bf16.msra.mxu0 0
    %143 = vmatpush.bf16.msra.mxu0 0
    %144 = vmatpush.bf16.msra.mxu0 0
    %145 = vmatpush.bf16.msra.mxu0 0
    %146 = vmatpush.bf16.msra.mxu0 0
    %147 = vmatpush.bf16.msra.mxu0 %v109
    %148 = vmatpush.bf16.msra.mxu0 %v105
    %149 = vmatpush.bf16.msra.mxu0 %v101
    %150 = vmatmul.bf16.gmra.mxu0 %v126
    %v151 = vpop.f32.mrf.mxu0
    %v152 = vadd.f32 0.0, %v151
    %v153 = vpop.f32.mrf.mxu0
    %v154 = vadd.f32 0.0, %v153
    %155 = vdwg.mxu0
    %156 = vmatpush.bf16.msra.mxu0 0
    %157 = vmatpush.bf16.msra.mxu0 0
    %158 = vmatpush.bf16.msra.mxu0 0
    %159 = vmatpush.bf16.msra.mxu0 0
    %160 = vmatpush.bf16.msra.mxu0 0
    %161 = vmatpush.bf16.msra.mxu0 %v110
    %162 = vmatpush.bf16.msra.mxu0 %v106
    %163 = vmatpush.bf16.msra.mxu0 %v102
    %164 = vmatmul.bf16.gmra.mxu0 %v126
    %v165 = vpop.f32.mrf.mxu0
    %v166 = vadd.f32 0.0, %v165
    %v167 = vpop.f32.mrf.mxu0
    %v168 = vadd.f32 0.0, %v167
    %169 = vdwg.mxu0
    %170 = vmatpush.bf16.msra.mxu0 0
    %171 = vmatpush.bf16.msra.mxu0 0
    %172 = vmatpush.bf16.msra.mxu0 0
    %173 = vmatpush.bf16.msra.mxu0 0
    %174 = vmatpush.bf16.msra.mxu0 0
    %175 = vmatpush.bf16.msra.mxu0 %v111
    %176 = vmatpush.bf16.msra.mxu0 %v107
    %177 = vmatpush.bf16.msra.mxu0 %v103
    %178 = vmatmul.bf16.gmra.mxu0 %v126
    %v179 = vpop.f32.mrf.mxu0
    %v180 = vadd.f32 0.0, %v179
    %v181 = vpop.f32.mrf.mxu0
    %v182 = vadd.f32 0.0, %v181
    %183 = vdwg.mxu0
    %184 = vst [vmem:[#allocation7] sm:$0xff] %v138
    %185 = vst [vmem:[#allocation7 + $0x8] sm:$0xff] %v152
    %186 = vst [vmem:[#allocation7 + $0x10] sm:$0xff] %v166
    %187 = vst [vmem:[#allocation7 + $0x18] sm:$0xff] %v180
    %188 = vst [vmem:[#allocation7 + $0x20] sm:$0xff] %v140
    %189 = vst [vmem:[#allocation7 + $0x28] sm:$0xff] %v154
    %190 = vst [vmem:[#allocation7 + $0x30] sm:$0xff] %v168
    %191 = vst [vmem:[#allocation7 + $0x38] sm:$0xff] %v182
    // Predicated region
    $region18: #{tpu_custom_call.1} parent=1 // pred_check
      _
    $region19: #{tpu_custom_call.1} parent=1 // pred_check_branch
      %193 = sbr.rel (0) target = $region21
    $region20: #{tpu_custom_call.1} parent=1 // pred_region
      %195 = vsyncadd [#allocation4], 0
      %s196 = sshll.u32 [#allocation7], 4
      %s197 = int_to_ptr.vmem [resolvable:$true] %s196
      %s198 = sshll.u32 %s2, 4
      %s199 = int_to_ptr.hbm [resolvable:$true] %s198
      %204 = dma.vmem_to_hbm [thread:$0]  %s197, 1024, %s199, [#allocation4], 512, 512, 32
    $region21: #{tpu_custom_call.1} parent=1 // pred_fallthru
      _
    // Predicated region
    $region22: #{tpu_custom_call.1} parent=1 // pred_check
      _
    $region23: #{tpu_custom_call.1} parent=1 // pred_check_branch
      %206 = sbr.rel (0) target = $region25
    $region24: #{tpu_custom_call.1} parent=1 // pred_region
      %208 = dma.done [#allocation4], 1024
    $region25: #{tpu_custom_call.1} parent=1 // pred_fallthru
      _
    %209 = vsyncpa [#allocation3], 1
    %210 = vsyncpa [#allocation6], 1
    %211 = vsyncpa [#allocation4], 1

</llo_original>
